<compile_context>
chip_gen: v5e
topology: v5e:2x2
jax: 0.10.0
libtpu: 0.0.40
codegen_flags: <defaults>
</compile_context>

<pallas_src>
import functools

import jax
import jax.numpy as jnp
from jax.experimental import pallas as pl
from jax.experimental.pallas import tpu as pltpu

LANE = 128  # TPU lane width; all padded dims are multiples of this.


def _round_up(x, m):
    return ((x + m - 1) // m) * m


def hgnnp_fused_kernel(*refs, n_layers):
    """Fused HGNN+ forward: all HGNNPConv layers + final sigmoid in one kernel.

    refs = (ht_de_hbm, h_dv_hbm, x_ref,
            w_0, b_0, ..., w_{L-1}, b_{L-1},
            o_ref,
            ht_vmem, hdv_vmem)
    """
    ht_hbm, hdv_hbm, x_ref = refs[0], refs[1], refs[2]
    o_ref = refs[3 + 2 * n_layers]
    ht_vmem = refs[4 + 2 * n_layers]
    hdv_vmem = refs[5 + 2 * n_layers]

    # DMA each aggregation operand into VMEM exactly once for the whole
    # forward pass (single-buffered scratch; no pipeline duplicate).
    pltpu.sync_copy(ht_hbm, ht_vmem)
    pltpu.sync_copy(hdv_hbm, hdv_vmem)
    ht = ht_vmem[...]          # (MP, NP) bf16 :  De^-1 H^T   (mean over vertices in edge)
    hdv = hdv_vmem[...]        # (NP, MP) bf16 :  Dv^-1 H     (mean over incident edges)

    t = x_ref[...]             # (NP, CinP) bf16, zero-padded rows/cols
    for i in range(n_layers):
        w = refs[3 + 2 * i][...]      # (rows_i, cp_i) bf16, zero-padded
        b = refs[4 + 2 * i][...]      # (1, cp_i) f32, zero-padded columns
        is_last = i == n_layers - 1
        # Reference order (HGNNPConv): linear (+ bias) first, then v2v mean
        # aggregation.  No aggregate-first reorder: it diverges for isolated
        # vertices and gains nothing at 128-padded channel widths.
        lin = jnp.dot(t, w, preferred_element_type=jnp.float32) + b
        edge = jnp.dot(ht, lin.astype(jnp.bfloat16),
                       preferred_element_type=jnp.float32)
        agg = jnp.dot(hdv, edge.astype(jnp.bfloat16),
                      preferred_element_type=jnp.float32)
        if is_last:
            t = jax.nn.sigmoid(agg)                          # f32 epilogue (EUP)
        else:
            t = jnp.maximum(agg, 0.0).astype(jnp.bfloat16)   # ReLU, back to bf16
    o_ref[...] = t.astype(o_ref.dtype)


def hgnnp_forward(X, H, params):
    """HGNN+ forward (eval mode) as one fused Pallas call.

    X: (N, C_in) features, H: (N, M) incidence matrix, params: [(W, b), ...].
    Returns (N, num_classes) float32 in [0, 1].
    """
    N, cin0 = X.shape
    M = H.shape[1]
    layer_dims = tuple((int(W.shape[0]), int(W.shape[1])) for W, _ in params)
    num_classes = layer_dims[-1][1]
    n_layers = len(layer_dims)

    # Pad vertices / edges / channels to lane multiples: unmasked vregs, full
    # MXU passes, lane-dense final store.  Per-layer padded output widths.
    NP = _round_up(N, LANE)
    MP = _round_up(M, LANE)
    cinp = _round_up(cin0, LANE)
    cps = [_round_up(c, LANE) for _, c in layer_dims]

    # Two-stage mean aggregation operands (O(N*M), replaces dense (N,N) A):
    #   edge   = (De^-1 H^T) @ lin
    #   vertex = (Dv^-1 H)   @ edge
    Hf = H.astype(jnp.float32)
    de = jnp.sum(Hf, axis=0)                      # (M,) edge degrees
    dv = jnp.sum(Hf, axis=1)                      # (N,) vertex degrees
    de_inv = jnp.where(de > 0, 1.0 / de, 0.0)
    dv_inv = jnp.where(dv > 0, 1.0 / dv, 0.0)
    ht_de = (Hf * de_inv[None, :]).T              # (M, N)
    h_dv = Hf * dv_inv[:, None]                   # (N, M)

    ht_p = jnp.zeros((MP, NP), jnp.bfloat16).at[:M, :N].set(
        ht_de.astype(jnp.bfloat16))
    hdv_p = jnp.zeros((NP, MP), jnp.bfloat16).at[:N, :M].set(
        h_dv.astype(jnp.bfloat16))
    x_p = jnp.zeros((NP, cinp), jnp.bfloat16).at[:N, :cin0].set(
        X.astype(jnp.bfloat16))

    operands = [ht_p, hdv_p, x_p]
    in_specs = [
        pl.BlockSpec(memory_space=pl.ANY),        # held once in VMEM scratch
        pl.BlockSpec(memory_space=pl.ANY),        # held once in VMEM scratch
        pl.BlockSpec(x_p.shape, lambda: (0, 0)),
    ]
    flops = 0
    for i, (W, b) in enumerate(params):
        cin, cout = layer_dims[i]
        rows = cinp if i == 0 else cps[i - 1]
        cp_i = cps[i]
        Wp = jnp.zeros((rows, cp_i), jnp.bfloat16).at[:cin, :cout].set(
            W.astype(jnp.bfloat16))
        bp = jnp.zeros((1, cp_i), jnp.float32).at[:, :cout].set(
            jnp.asarray(b, jnp.float32).reshape(1, -1))
        operands += [Wp, bp]
        in_specs += [pl.BlockSpec(Wp.shape, lambda: (0, 0)),
                     pl.BlockSpec(bp.shape, lambda: (0, 0))]
        # Executed (padded) MXU flops: linear + two-stage aggregation.
        flops += (2 * NP * rows * cp_i
                  + 2 * MP * NP * cp_i
                  + 2 * NP * MP * cp_i)

    out_cp = cps[-1]
    in_bytes = sum(op.size * op.dtype.itemsize for op in operands)
    out_bytes = NP * out_cp * 2                   # bf16 writeback
    cost = pl.CostEstimate(flops=int(flops),
                           transcendentals=int(NP * out_cp),
                           bytes_accessed=int(in_bytes + out_bytes))

    # VMEM budget: H operands live once (scratch); remaining operands/output
    # may be double-buffered by the (trivial) pipeline; ~3 f32 intermediate
    # slabs for lin/edge/agg.  +50% headroom, floor 32 MiB, cap 64 MiB (v7x).
    cp_max = max(cps + [cinp])
    scratch_bytes = 2 * (MP * NP) * 2
    other_bytes = 2 * (in_bytes - scratch_bytes + out_bytes)
    interm_bytes = (2 * NP + MP) * cp_max * 4
    need = scratch_bytes + other_bytes + interm_bytes
    vmem_limit = int(min(max(int(need * 1.5), 32 * 1024 * 1024),
                         64 * 1024 * 1024))

    kernel = functools.partial(hgnnp_fused_kernel, n_layers=n_layers)
    out = pl.pallas_call(
        kernel,
        out_shape=jax.ShapeDtypeStruct((NP, out_cp), jnp.bfloat16),
        in_specs=in_specs,
        out_specs=pl.BlockSpec((NP, out_cp), lambda: (0, 0)),
        scratch_shapes=[pltpu.VMEM((MP, NP), jnp.bfloat16),
                        pltpu.VMEM((NP, MP), jnp.bfloat16)],
        compiler_params=pltpu.CompilerParams(vmem_limit_bytes=vmem_limit),
        cost_estimate=cost,
    )(*operands)
    # TODO(synk): for N/M beyond the VMEM budget (esp. v7x, 64 MiB), split into
    # one pallas_call per layer with a row-tiled grid over NP and a contraction
    # axis over MP, dimension_semantics=("parallel", "arbitrary"), to use both
    # v7x TensorCores; the fused gridless path is kept while padded operands fit.
    return out[:N, :num_classes].astype(jnp.float32)


def init_linear(key, fan_in, fan_out):
    """Deterministic nn.Linear-style init: U(-1/sqrt(fan_in), 1/sqrt(fan_in))."""
    kw, kb = jax.random.split(key)
    bound = 1.0 / jnp.sqrt(jnp.float32(fan_in))
    W = jax.random.uniform(kw, (fan_in, fan_out), jnp.float32, -bound, bound)
    b = jax.random.uniform(kb, (1, fan_out), jnp.float32, -bound, bound)
    return W, b


if __name__ == "__main__":
    key = jax.random.PRNGKey(0)
    k_x, k_h, k_l0, k_l1 = jax.random.split(key, 4)

    # Small synthetic hypergraph: N vertices, M hyperedges.
    N, M = 64, 32
    in_channels, hid_channels, num_classes = 16, 32, 8

    # Input vertex features (N, C_in).
    X = jax.random.normal(k_x, (N, in_channels), jnp.float32)

    # Random incidence matrix; guarantee every vertex / edge is non-empty.
    H = (jax.random.uniform(k_h, (N, M)) < 0.25).astype(jnp.float32)
    H = H.at[jnp.arange(N), jnp.arange(N) % M].set(1.0)

    # num_conv=2 -> two HGNNPConv layers: (in->hid), (hid->classes, is_last).
    # TODO(synk): dropout (drop_rate=0.5) is identity in eval mode; not applied.
    # TODO(synk): use_bn=False default -> no BatchNorm branch implemented.
    params = [
        init_linear(k_l0, in_channels, hid_channels),
        init_linear(k_l1, hid_channels, num_classes),
    ]

    out = hgnnp_forward(X, H, params)
    out = jax.block_until_ready(out)

    assert out.shape == (N, num_classes)
    assert bool(jnp.all(jnp.isfinite(out)))
    assert bool(jnp.all((out >= 0.0) & (out <= 1.0)))  # sigmoid range
    print("KERNEL_OK")
</pallas_src>

<mosaic_0001>
module attributes {stable_mosaic.version = 11 : i64} {
  func.func @hgnnp_fused_kernel(%arg0: memref<128x128xbf16, #tpu.memory_space<any>>, %arg1: memref<128x128xbf16, #tpu.memory_space<any>>, %arg2: memref<128x128xbf16, #tpu.memory_space<vmem>>, %arg3: memref<128x128xbf16, #tpu.memory_space<vmem>>, %arg4: memref<1x128xf32, #tpu.memory_space<vmem>>, %arg5: memref<128x128xbf16, #tpu.memory_space<vmem>>, %arg6: memref<1x128xf32, #tpu.memory_space<vmem>>, %arg7: memref<128x128xbf16, #tpu.memory_space<vmem>>, %arg8: memref<128x128xbf16, #tpu.memory_space<vmem>>, %arg9: memref<128x128xbf16, #tpu.memory_space<vmem>>) attributes {dimension_semantics = [], scalar_prefetch = 0 : i64, scratch_operands = 2 : i64, tpu.core_type = #tpu.core_type<tc>} {
    "tpu.region"() ({
      %31 = tpu.sem_alloc : memref<!tpu.dma_semaphore, #tpu.memory_space<semaphore_mem>>
      tpu.enqueue_dma source(%arg0 : memref<128x128xbf16, #tpu.memory_space<any>>) target(%arg8 : memref<128x128xbf16, #tpu.memory_space<vmem>>) target_semaphore(%31 : memref<!tpu.dma_semaphore, #tpu.memory_space<semaphore_mem>>)
      tpu.wait_dma2 semaphore(%31 : memref<!tpu.dma_semaphore, #tpu.memory_space<semaphore_mem>>) src(%arg0 : memref<128x128xbf16, #tpu.memory_space<any>>) dst(%arg8 : memref<128x128xbf16, #tpu.memory_space<vmem>>)
      tpu.yield
    }) : () -> ()
    "tpu.region"() ({
      %31 = tpu.sem_alloc : memref<!tpu.dma_semaphore, #tpu.memory_space<semaphore_mem>>
      tpu.enqueue_dma source(%arg1 : memref<128x128xbf16, #tpu.memory_space<any>>) target(%arg9 : memref<128x128xbf16, #tpu.memory_space<vmem>>) target_semaphore(%31 : memref<!tpu.dma_semaphore, #tpu.memory_space<semaphore_mem>>)
      tpu.wait_dma2 semaphore(%31 : memref<!tpu.dma_semaphore, #tpu.memory_space<semaphore_mem>>) src(%arg1 : memref<128x128xbf16, #tpu.memory_space<any>>) dst(%arg9 : memref<128x128xbf16, #tpu.memory_space<vmem>>)
      tpu.yield
    }) : () -> ()
    %c0 = arith.constant 0 : index
    %c0_0 = arith.constant 0 : index
    %0 = vector.load %arg8[%c0, %c0_0] : memref<128x128xbf16, #tpu.memory_space<vmem>>, vector<128x128xbf16>
    %c0_1 = arith.constant 0 : index
    %c0_2 = arith.constant 0 : index
    %1 = vector.load %arg9[%c0_1, %c0_2] : memref<128x128xbf16, #tpu.memory_space<vmem>>, vector<128x128xbf16>
    %c0_3 = arith.constant 0 : index
    %c0_4 = arith.constant 0 : index
    %2 = vector.load %arg2[%c0_3, %c0_4] : memref<128x128xbf16, #tpu.memory_space<vmem>>, vector<128x128xbf16>
    %c0_5 = arith.constant 0 : index
    %c0_6 = arith.constant 0 : index
    %3 = vector.load %arg3[%c0_5, %c0_6] : memref<128x128xbf16, #tpu.memory_space<vmem>>, vector<128x128xbf16>
    %c0_7 = arith.constant 0 : index
    %c0_8 = arith.constant 0 : index
    %4 = vector.load %arg4[%c0_7, %c0_8] : memref<1x128xf32, #tpu.memory_space<vmem>>, vector<1x128xf32>
    %cst = arith.constant dense<0.000000e+00> : vector<128x128xf32>
    %5 = tpu.matmul %2, %3, %cst {dimension_numbers = #tpu.dot_dimension_numbers<[1], [0], [0], [1], [0, 0, 1, 1], [], []>} : vector<128x128xbf16>, vector<128x128xbf16>, vector<128x128xf32> -> vector<128x128xf32>
    %6 = vector.broadcast %4 : vector<1x128xf32> to vector<128x128xf32>
    %7 = arith.addf %5, %6 : vector<128x128xf32>
    %8 = arith.truncf %7 : vector<128x128xf32> to vector<128x128xbf16>
    %cst_9 = arith.constant dense<0.000000e+00> : vector<128x128xf32>
    %9 = tpu.matmul %0, %8, %cst_9 {dimension_numbers = #tpu.dot_dimension_numbers<[1], [0], [0], [1], [0, 0, 1, 1], [], []>} : vector<128x128xbf16>, vector<128x128xbf16>, vector<128x128xf32> -> vector<128x128xf32>
    %10 = arith.truncf %9 : vector<128x128xf32> to vector<128x128xbf16>
    %cst_10 = arith.constant dense<0.000000e+00> : vector<128x128xf32>
    %11 = tpu.matmul %1, %10, %cst_10 {dimension_numbers = #tpu.dot_dimension_numbers<[1], [0], [0], [1], [0, 0, 1, 1], [], []>} : vector<128x128xbf16>, vector<128x128xbf16>, vector<128x128xf32> -> vector<128x128xf32>
    %cst_11 = arith.constant 0.000000e+00 : f32
    %12 = vector.broadcast %cst_11 : f32 to vector<128x128xf32>
    %13 = arith.maximumf %11, %12 : vector<128x128xf32>
    %14 = arith.truncf %13 : vector<128x128xf32> to vector<128x128xbf16>
    %c0_12 = arith.constant 0 : index
    %c0_13 = arith.constant 0 : index
    %15 = vector.load %arg5[%c0_12, %c0_13] : memref<128x128xbf16, #tpu.memory_space<vmem>>, vector<128x128xbf16>
    %c0_14 = arith.constant 0 : index
    %c0_15 = arith.constant 0 : index
    %16 = vector.load %arg6[%c0_14, %c0_15] : memref<1x128xf32, #tpu.memory_space<vmem>>, vector<1x128xf32>
    %cst_16 = arith.constant dense<0.000000e+00> : vector<128x128xf32>
    %17 = tpu.matmul %14, %15, %cst_16 {dimension_numbers = #tpu.dot_dimension_numbers<[1], [0], [0], [1], [0, 0, 1, 1], [], []>} : vector<128x128xbf16>, vector<128x128xbf16>, vector<128x128xf32> -> vector<128x128xf32>
    %18 = vector.broadcast %16 : vector<1x128xf32> to vector<128x128xf32>
    %19 = arith.addf %17, %18 : vector<128x128xf32>
    %20 = arith.truncf %19 : vector<128x128xf32> to vector<128x128xbf16>
    %cst_17 = arith.constant dense<0.000000e+00> : vector<128x128xf32>
    %21 = tpu.matmul %0, %20, %cst_17 {dimension_numbers = #tpu.dot_dimension_numbers<[1], [0], [0], [1], [0, 0, 1, 1], [], []>} : vector<128x128xbf16>, vector<128x128xbf16>, vector<128x128xf32> -> vector<128x128xf32>
    %22 = arith.truncf %21 : vector<128x128xf32> to vector<128x128xbf16>
    %cst_18 = arith.constant dense<0.000000e+00> : vector<128x128xf32>
    %23 = tpu.matmul %1, %22, %cst_18 {dimension_numbers = #tpu.dot_dimension_numbers<[1], [0], [0], [1], [0, 0, 1, 1], [], []>} : vector<128x128xbf16>, vector<128x128xbf16>, vector<128x128xf32> -> vector<128x128xf32>
    %24 = arith.negf %23 : vector<128x128xf32>
    %25 = math.exp %24 : vector<128x128xf32>
    %cst_19 = arith.constant 1.000000e+00 : f32
    %26 = vector.broadcast %cst_19 : f32 to vector<128x128xf32>
    %27 = arith.addf %26, %25 : vector<128x128xf32>
    %28 = arith.divf %26, %27 : vector<128x128xf32>
    %29 = arith.truncf %28 : vector<128x128xf32> to vector<128x128xbf16>
    %c0_20 = arith.constant 0 : index
    %c0_21 = arith.constant 0 : index
    %30 = vector.load %arg7[%c0_20, %c0_21] : memref<128x128xbf16, #tpu.memory_space<vmem>>, vector<128x128xbf16>
    tpu.vector_store %arg7[%c0_20, %c0_21], %29 {strides = array<i32>} : memref<128x128xbf16, #tpu.memory_space<vmem>>, vector<128x128xbf16>,
    return
  }
}

</mosaic_0001>

<llo_original>
// kernel: tpu_custom_call.1
$region0: #{tpu_custom_call.1}
  #allocation0 [shape = 'u32[]', space=smem, size = 0x4, offset = 0x4, fixed_abs, tag = 'smem constant byte address 0x4 - core index']
  #allocation1 [shape = 'u32[72,128]{1,0:T(1,128)}', space=vmem, size = 0x9000, scoped, tag = 'internal scratch']
  #allocation2 [shape = 'bf16[128,128]{1,0:T(8,128)(2,1)}', space=vmem, size = 0x8000, scoped, tag = 'scratch operand']
  #allocation3 [shape = 'bf16[128,128]{1,0:T(8,128)(2,1)}', space=vmem, size = 0x8000, scoped, tag = 'scratch operand']
  #allocation12 [shape = 's32[]', space=sflag, size = 0x4, offset = 0, fixed_abs, tag = 'sflag constant byte address 0x0 - dummy sync flag']
  #allocation13 [shape = 's32[]', space=sflag, size = 0x4, offset = 0, fixed_abs, tag = 'sflag constant byte address 0x0 - dummy sync flag']
  #allocation14 [shape = 'u32[]', space=smem, size = 0x4, offset = 0x44, fixed_abs, tag = 'smem constant byte address 0x44 - assertion arg 0']
  #allocation15 [shape = 'u32[]', space=smem, size = 0x4, offset = 0x48, fixed_abs, tag = 'smem constant byte address 0x48 - assertion arg 1']
  #allocation17 [shape = 's32[]', space=sflag, size = 0x4, offset = 0, fixed_abs, tag = 'sflag constant byte address 0x0 - dummy sync flag']
  #allocation18 [shape = 's32[]', space=sflag, size = 0x4, offset = 0, fixed_abs, tag = 'sflag constant byte address 0x0 - dummy sync flag']
  %s0 = inlined_call_operand.hbm [shape: bf16[128,128], index: 0, kind: input, shape index: {}]
  %s1 = inlined_call_operand.hbm [shape: bf16[128,128], index: 1, kind: input, shape index: {}]
  %s2 = inlined_call_operand.hbm [shape: bf16[128,128], index: 2, kind: input, shape index: {}]
  %s3 = inlined_call_operand.hbm [shape: bf16[128,128], index: 3, kind: input, shape index: {}]
  %s4 = inlined_call_operand.vmem [shape: f32[1,128], index: 4, kind: input, shape index: {}]
  %s5 = inlined_call_operand.hbm [shape: bf16[128,128], index: 5, kind: input, shape index: {}]
  %s6 = inlined_call_operand.vmem [shape: f32[1,128], index: 6, kind: input, shape index: {}]
  %s7 = inlined_call_operand.hbm [shape: bf16[128,128], index: 7, kind: output, shape index: {}]
  %s8 = sld [smem:[#allocation0]]
  $region52: #{tpu_custom_call.1} parent=0
    _
  %s10 = ssub.s32 1, %s8
  %s11 = scalar_select 0, %s10, %s8
  $region1: #{tpu_custom_call.1} parent=0
    #allocation4 [shape = 'u8[32768]{0}', space=vmem, size = 0x8000, scoped, tag = 'input window, operand 2, single buffered']
    #allocation5 [shape = 's32[1]{0}', space=sflag, size = 0x4, scoped, tag = 'scoped memory for tpu_custom_call.1']
    #allocation6 [shape = 's32[1]{0}', space=sflag, size = 0x4, scoped, tag = 'scoped memory for tpu_custom_call.1']
    #allocation7 [shape = 'u8[32768]{0}', space=vmem, size = 0x8000, scoped, tag = 'input window, operand 3, single buffered']
    #allocation8 [shape = 's32[1]{0}', space=sflag, size = 0x4, scoped, tag = 'scoped memory for tpu_custom_call.1']
    #allocation9 [shape = 'u8[32768]{0}', space=vmem, size = 0x8000, scoped, tag = 'input window, operand 5, single buffered']
    #allocation10 [shape = 'u8[32768]{0}', space=vmem, size = 0x8000, scoped, tag = 'output window, operand 0, single buffered']
    %12 = vsyncpa [#allocation5], 0
    %13 = vsyncpa [#allocation8], 0
    %14 = vsyncpa [#allocation6], 0
    // Predicated region
    $region2: #{tpu_custom_call.1} parent=1 // pred_check
      _
    $region3: #{tpu_custom_call.1} parent=1 // pred_check_branch
      %16 = sbr.rel (0) target = $region5
    $region4: #{tpu_custom_call.1} parent=1 // pred_region
      %18 = vsyncadd [#allocation5], 0
      %s19 = sshll.u32 %s2, 4
      %s20 = int_to_ptr.hbm [resolvable:$true] %s19
      %s21 = sshll.u32 [#allocation4], 4
      %s22 = int_to_ptr.vmem [resolvable:$true] %s21
      %27 = dma.hbm_to_vmem [thread:$0]  %s20, 1024, %s22, [#allocation5], 64, 64, 4
    $region5: #{tpu_custom_call.1} parent=1 // pred_fallthru
      _
    // Predicated region
    $region6: #{tpu_custom_call.1} parent=1 // pred_check
      _
    $region7: #{tpu_custom_call.1} parent=1 // pred_check_branch
      %29 = sbr.rel (0) target = $region9
    $region8: #{tpu_custom_call.1} parent=1 // pred_region
      %31 = vsyncadd [#allocation8], 0
      %s32 = sshll.u32 %s3, 4
      %s33 = int_to_ptr.hbm [resolvable:$true] %s32
      %s34 = sshll.u32 [#allocation7], 4
      %s35 = int_to_ptr.vmem [resolvable:$true] %s34
      %40 = dma.hbm_to_vmem [thread:$0]  %s33, 1024, %s35, [#allocation8], 64, 64, 4
    $region9: #{tpu_custom_call.1} parent=1 // pred_fallthru
      _
    // Predicated region
    $region10: #{tpu_custom_call.1} parent=1 // pred_check
      _
    $region11: #{tpu_custom_call.1} parent=1 // pred_check_branch
      %42 = sbr.rel (0) target = $region13
    $region12: #{tpu_custom_call.1} parent=1 // pred_region
      _
    $region13: #{tpu_custom_call.1} parent=1 // pred_fallthru
      _
    // Predicated region
    $region14: #{tpu_custom_call.1} parent=1 // pred_check
      _
    $region15: #{tpu_custom_call.1} parent=1 // pred_check_branch
      %44 = sbr.rel (0) target = $region17
    $region16: #{tpu_custom_call.1} parent=1 // pred_region
      %46 = vsyncadd [#allocation8], 0
      %s47 = sshll.u32 %s5, 4
      %s48 = int_to_ptr.hbm [resolvable:$true] %s47
      %s49 = sshll.u32 [#allocation9], 4
      %s50 = int_to_ptr.vmem [resolvable:$true] %s49
      %55 = dma.hbm_to_vmem [thread:$0]  %s48, 1024, %s50, [#allocation8], 64, 64, 4
    $region17: #{tpu_custom_call.1} parent=1 // pred_fallthru
      _
    // Predicated region
    $region18: #{tpu_custom_call.1} parent=1 // pred_check
      _
    $region19: #{tpu_custom_call.1} parent=1 // pred_check_branch
      %57 = sbr.rel (0) target = $region21
    $region20: #{tpu_custom_call.1} parent=1 // pred_region
      _
    $region21: #{tpu_custom_call.1} parent=1 // pred_fallthru
      _
    // Predicated region
    $region22: #{tpu_custom_call.1} parent=1 // pred_check
      _
    $region23: #{tpu_custom_call.1} parent=1 // pred_check_branch
      %59 = sbr.rel (0) target = $region25
    $region24: #{tpu_custom_call.1} parent=1 // pred_region
      %61 = dma.done [#allocation5], 1024
    $region25: #{tpu_custom_call.1} parent=1 // pred_fallthru
      _
    // Predicated region
    $region26: #{tpu_custom_call.1} parent=1 // pred_check
      _
    $region27: #{tpu_custom_call.1} parent=1 // pred_check_branch
      %63 = sbr.rel (0) target = $region29
    $region28: #{tpu_custom_call.1} parent=1 // pred_region
      %65 = dma.done [#allocation8], 1024
    $region29: #{tpu_custom_call.1} parent=1 // pred_fallthru
      _
    // Predicated region
    $region30: #{tpu_custom_call.1} parent=1 // pred_check
      _
    $region31: #{tpu_custom_call.1} parent=1 // pred_check_branch
      %67 = sbr.rel (0) target = $region33
    $region32: #{tpu_custom_call.1} parent=1 // pred_region
      %69 = dma.done [#allocation8], 1024
    $region33: #{tpu_custom_call.1} parent=1 // pred_fallthru
      _
    $region34: #{tpu_custom_call.1} parent=1
      #allocation11 [shape = 's32[1]{0}', space=sflag, size = 0x4, scoped, tag = 'scoped memory for tpu_custom_call.1']
      // Predicated region
      $region35: #{tpu_custom_call.1} parent=34 // pred_check
        _
      $region36: #{tpu_custom_call.1} parent=34 // pred_check_branch
        %71 = sbr.rel target = $region38
      $region37: #{tpu_custom_call.1} parent=34 // pred_region
        %72 = sst [smem:[#allocation14]] [#allocation13]
        %73 = sst [smem:[#allocation15]] [#allocation12]
      $region38: #{tpu_custom_call.1} parent=34 // pred_fallthru
        _
      %75 = shalt.err (0)
      %s77 = sshll.u32 %s0, 4
      %s78 = int_to_ptr.hbm [resolvable:$true] %s77
      %s79 = sshll.u32 [#allocation2], 4
      %s80 = int_to_ptr.vmem [resolvable:$true] %s79
      %82 = dma.hbm_to_vmem [thread:$0]  %s78, 1024, %s80, [#allocation11]
      %s83 = smul.u32 4, 16
      %s84 = smul.u32 %s83, 1
      %s85 = sshll.u32 %s84, 4
      %86 = dma.done [#allocation11], %s85
    $region39: #{tpu_custom_call.1} parent=1
      #allocation16 [shape = 's32[1]{0}', space=sflag, size = 0x4, scoped, tag = 'scoped memory for tpu_custom_call.1']
      // Predicated region
      $region40: #{tpu_custom_call.1} parent=39 // pred_check
        _
      $region41: #{tpu_custom_call.1} parent=39 // pred_check_branch
        %88 = sbr.rel target = $region43
      $region42: #{tpu_custom_call.1} parent=39 // pred_region
        %89 = sst [smem:[#allocation14]] [#allocation18]
        %90 = sst [smem:[#allocation15]] [#allocation17]
      $region43: #{tpu_custom_call.1} parent=39 // pred_fallthru
        _
      %92 = shalt.err (0)
      %s94 = sshll.u32 %s1, 4
      %s95 = int_to_ptr.hbm [resolvable:$true] %s94
      %s96 = sshll.u32 [#allocation3], 4
      %s97 = int_to_ptr.vmem [resolvable:$true] %s96
      %99 = dma.hbm_to_vmem [thread:$0]  %s95, 1024, %s97, [#allocation16]
      %s100 = smul.u32 4, 16
      %s101 = smul.u32 %s100, 1
      %s102 = sshll.u32 %s101, 4
      %103 = dma.done [#allocation16], %s102
    %v104 = vld [vmem:[#allocation2] sm:$0xf]
    %v105 = vld [vmem:[#allocation2 + $0x4] sm:$0xf]
    %v106 = vld [vmem:[#allocation2 + $0x8] sm:$0xf]
    %v107 = vld [vmem:[#allocation2 + $0xc] sm:$0xf]
    %v108 = vld [vmem:[#allocation2 + $0x10] sm:$0xf]
    %v109 = vld [vmem:[#allocation2 + $0x14] sm:$0xf]
    %v110 = vld [vmem:[#allocation2 + $0x18] sm:$0xf]
    %v111 = vld [vmem:[#allocation2 + $0x1c] sm:$0xf]
    %v112 = vld [vmem:[#allocation2 + $0x20] sm:$0xf]
    %v113 = vld [vmem:[#allocation2 + $0x24] sm:$0xf]
    %v114 = vld [vmem:[#allocation2 + $0x28] sm:$0xf]
    %v115 = vld [vmem:[#allocation2 + $0x2c] sm:$0xf]
    %v116 = vld [vmem:[#allocation2 + $0x30] sm:$0xf]
    %v117 = vld [vmem:[#allocation2 + $0x34] sm:$0xf]
    %v118 = vld [vmem:[#allocation2 + $0x38] sm:$0xf]
    %v119 = vld [vmem:[#allocation2 + $0x3c] sm:$0xf]
    %v120 = vld [vmem:[#allocation3] sm:$0xf]
    %v121 = vld [vmem:[#allocation3 + $0x4] sm:$0xf]
    %v122 = vld [vmem:[#allocation3 + $0x8] sm:$0xf]
    %v123 = vld [vmem:[#allocation3 + $0xc] sm:$0xf]
    %v124 = vld [vmem:[#allocation3 + $0x10] sm:$0xf]
    %v125 = vld [vmem:[#allocation3 + $0x14] sm:$0xf]
    %v126 = vld [vmem:[#allocation3 + $0x18] sm:$0xf]
    %v127 = vld [vmem:[#allocation3 + $0x1c] sm:$0xf]
    %v128 = vld [vmem:[#allocation3 + $0x20] sm:$0xf]
    %v129 = vld [vmem:[#allocation3 + $0x24] sm:$0xf]
    %v130 = vld [vmem:[#allocation3 + $0x28] sm:$0xf]
    %v131 = vld [vmem:[#allocation3 + $0x2c] sm:$0xf]
    %v132 = vld [vmem:[#allocation3 + $0x30] sm:$0xf]
    %v133 = vld [vmem:[#allocation3 + $0x34] sm:$0xf]
    %v134 = vld [vmem:[#allocation3 + $0x38] sm:$0xf]
    %v135 = vld [vmem:[#allocation3 + $0x3c] sm:$0xf]
    %v136 = vld [vmem:[#allocation4] sm:$0xf]
    %v137 = vld [vmem:[#allocation4 + $0x4] sm:$0xf]
    %v138 = vld [vmem:[#allocation4 + $0x8] sm:$0xf]
    %v139 = vld [vmem:[#allocation4 + $0xc] sm:$0xf]
    %v140 = vld [vmem:[#allocation4 + $0x10] sm:$0xf]
    %v141 = vld [vmem:[#allocation4 + $0x14] sm:$0xf]
    %v142 = vld [vmem:[#allocation4 + $0x18] sm:$0xf]
    %v143 = vld [vmem:[#allocation4 + $0x1c] sm:$0xf]
    %v144 = vld [vmem:[#allocation4 + $0x20] sm:$0xf]
    %v145 = vld [vmem:[#allocation4 + $0x24] sm:$0xf]
    %v146 = vld [vmem:[#allocation4 + $0x28] sm:$0xf]
    %v147 = vld [vmem:[#allocation4 + $0x2c] sm:$0xf]
    %v148 = vld [vmem:[#allocation4 + $0x30] sm:$0xf]
    %v149 = vld [vmem:[#allocation4 + $0x34] sm:$0xf]
    %v150 = vld [vmem:[#allocation4 + $0x38] sm:$0xf]
    %v151 = vld [vmem:[#allocation4 + $0x3c] sm:$0xf]
    %v152 = vld [vmem:[#allocation7] sm:$0xf]
    %v153 = vld [vmem:[#allocation7 + $0x4] sm:$0xf]
    %v154 = vld [vmem:[#allocation7 + $0x8] sm:$0xf]
    %v155 = vld [vmem:[#allocation7 + $0xc] sm:$0xf]
    %v156 = vld [vmem:[#allocation7 + $0x10] sm:$0xf]
    %v157 = vld [vmem:[#allocation7 + $0x14] sm:$0xf]
    %v158 = vld [vmem:[#allocation7 + $0x18] sm:$0xf]
    %v159 = vld [vmem:[#allocation7 + $0x1c] sm:$0xf]
    %v160 = vld [vmem:[#allocation7 + $0x20] sm:$0xf]
    %v161 = vld [vmem:[#allocation7 + $0x24] sm:$0xf]
    %v162 = vld [vmem:[#allocation7 + $0x28] sm:$0xf]
    %v163 = vld [vmem:[#allocation7 + $0x2c] sm:$0xf]
    %v164 = vld [vmem:[#allocation7 + $0x30] sm:$0xf]
    %v165 = vld [vmem:[#allocation7 + $0x34] sm:$0xf]
    %v166 = vld [vmem:[#allocation7 + $0x38] sm:$0xf]
    %v167 = vld [vmem:[#allocation7 + $0x3c] sm:$0xf]
    %v168 = vld [vmem:[%s4] sm:$0x1]
    %v170 = vperm.slane %v168, 0
    %v188 = vunpack.c.l.b16 %v136
    %v189 = vunpack.c.l.b16 %v137
    %v190 = vunpack.c.l.b16 %v138
    %v191 = vunpack.c.l.b16 %v139
    %v192 = vunpack.c.l.b16 %v140
    %v193 = vunpack.c.l.b16 %v141
    %v194 = vunpack.c.l.b16 %v142
    %v195 = vunpack.c.l.b16 %v143
    %v196 = vunpack.c.l.b16 %v144
    %v197 = vunpack.c.l.b16 %v145
    %v198 = vunpack.c.l.b16 %v146
    %v199 = vunpack.c.l.b16 %v147
    %v200 = vunpack.c.l.b16 %v148
    %v201 = vunpack.c.l.b16 %v149
    %v202 = vunpack.c.l.b16 %v150
    %v203 = vunpack.c.l.b16 %v151
    %v204 = vpack.c.b16 %v189, %v188
    %v205 = vpack.c.b16 %v191, %v190
    %v206 = vpack.c.b16 %v193, %v192
    %v207 = vpack.c.b16 %v195, %v194
    %v208 = vpack.c.b16 %v197, %v196
    %v209 = vpack.c.b16 %v199, %v198
    %v210 = vpack.c.b16 %v201, %v200
    %v211 = vpack.c.b16 %v203, %v202
    %v236 = vunpack.c.l.b16 %v152
    %v237 = vunpack.c.l.b16 %v153
    %v238 = vunpack.c.l.b16 %v154
    %v239 = vunpack.c.l.b16 %v155
    %v240 = vunpack.c.l.b16 %v156
    %v241 = vunpack.c.l.b16 %v157
    %v242 = vunpack.c.l.b16 %v158
    %v243 = vunpack.c.l.b16 %v159
    %v244 = vunpack.c.l.b16 %v160
    %v245 = vunpack.c.l.b16 %v161
    %v246 = vunpack.c.l.b16 %v162
    %v247 = vunpack.c.l.b16 %v163
    %v248 = vunpack.c.l.b16 %v164
    %v249 = vunpack.c.l.b16 %v165
    %v250 = vunpack.c.l.b16 %v166
    %v251 = vunpack.c.l.b16 %v167
    %v252 = vpack.c.b16 %v237, %v236
    %v253 = vpack.c.b16 %v239, %v238
    %v254 = vpack.c.b16 %v241, %v240
    %v255 = vpack.c.b16 %v243, %v242
    %v256 = vpack.c.b16 %v245, %v244
    %v257 = vpack.c.b16 %v247, %v246
    %v258 = vpack.c.b16 %v249, %v248
    %v259 = vpack.c.b16 %v251, %v250
    %268 = vmatpush.bf16.msra.mxu0 %v259
    %269 = vmatpush.bf16.msra.mxu0 %v258
    %270 = vmatpush.bf16.msra.mxu0 %v257
    %271 = vmatpush.bf16.msra.mxu0 %v256
    %272 = vmatpush.bf16.msra.mxu0 %v255
    %273 = vmatpush.bf16.msra.mxu0 %v254
    %274 = vmatpush.bf16.msra.mxu0 %v253
    %275 = vmatpush.bf16.msra.mxu0 %v252
    %276 = vmatmul.bf16.gmra.mxu0 %v204
    %v277 = vpop.f32.mrf.mxu0
    %v278 = vadd.f32 %v170, %v277
    %v279 = vpop.f32.mrf.mxu0
    %v280 = vadd.f32 %v170, %v279
    %281 = vmatmul.bf16.gmra.mxu0 %v205
    %v282 = vpop.f32.mrf.mxu0
    %v283 = vadd.f32 %v170, %v282
    %v284 = vpop.f32.mrf.mxu0
    %v285 = vadd.f32 %v170, %v284
    %286 = vmatmul.bf16.gmra.mxu0 %v206
    %v287 = vpop.f32.mrf.mxu0
    %v288 = vadd.f32 %v170, %v287
    %v289 = vpop.f32.mrf.mxu0
    %v290 = vadd.f32 %v170, %v289
    %291 = vmatmul.bf16.gmra.mxu0 %v207
    %v292 = vpop.f32.mrf.mxu0
    %v293 = vadd.f32 %v170, %v292
    %v294 = vpop.f32.mrf.mxu0
    %v295 = vadd.f32 %v170, %v294
    %296 = vmatmul.bf16.gmra.mxu0 %v208
    %v297 = vpop.f32.mrf.mxu0
    %v298 = vadd.f32 %v170, %v297
    %v299 = vpop.f32.mrf.mxu0
    %v300 = vadd.f32 %v170, %v299
    %301 = vmatmul.bf16.gmra.mxu0 %v209
    %v302 = vpop.f32.mrf.mxu0
    %v303 = vadd.f32 %v170, %v302
    %v304 = vpop.f32.mrf.mxu0
    %v305 = vadd.f32 %v170, %v304
    %306 = vmatmul.bf16.gmra.mxu0 %v210
    %v307 = vpop.f32.mrf.mxu0
    %v308 = vadd.f32 %v170, %v307
    %v309 = vpop.f32.mrf.mxu0
    %v310 = vadd.f32 %v170, %v309
    %311 = vmatmul.bf16.gmra.mxu0 %v211
    %v312 = vpop.f32.mrf.mxu0
    %v313 = vadd.f32 %v170, %v312
    %v314 = vpop.f32.mrf.mxu0
    %v315 = vadd.f32 %v170, %v314
    %316 = vdwg.mxu0
    %v317 = vpack.c.bf16 %v280, %v278
    %v318 = vpack.c.bf16 %v285, %v283
    %v319 = vpack.c.bf16 %v290, %v288
    %v320 = vpack.c.bf16 %v295, %v293
    %v321 = vpack.c.bf16 %v300, %v298
    %v322 = vpack.c.bf16 %v305, %v303
    %v323 = vpack.c.bf16 %v310, %v308
    %v324 = vpack.c.bf16 %v315, %v313
    %v341 = vunpack.c.l.b16 %v104
    %v342 = vunpack.c.l.b16 %v105
    %v343 = vunpack.c.l.b16 %v106
    %v344 = vunpack.c.l.b16 %v107
    %v345 = vunpack.c.l.b16 %v108
    %v346 = vunpack.c.l.b16 %v109
    %v347 = vunpack.c.l.b16 %v110
    %v348 = vunpack.c.l.b16 %v111
    %v349 = vunpack.c.l.b16 %v112
    %v350 = vunpack.c.l.b16 %v113
    %v351 = vunpack.c.l.b16 %v114
    %v352 = vunpack.c.l.b16 %v115
    %v353 = vunpack.c.l.b16 %v116
    %v354 = vunpack.c.l.b16 %v117
    %v355 = vunpack.c.l.b16 %v118
    %v356 = vunpack.c.l.b16 %v119
    %v357 = vpack.c.b16 %v342, %v341
    %v358 = vpack.c.b16 %v344, %v343
    %v359 = vpack.c.b16 %v346, %v345
    %v360 = vpack.c.b16 %v348, %v347
    %v361 = vpack.c.b16 %v350, %v349
    %v362 = vpack.c.b16 %v352, %v351
    %v363 = vpack.c.b16 %v354, %v353
    %v364 = vpack.c.b16 %v356, %v355
    %373 = vmatpush.bf16.msra.mxu0 %v324
    %374 = vmatpush.bf16.msra.mxu0 %v323
    %375 = vmatpush.bf16.msra.mxu0 %v322
    %376 = vmatpush.bf16.msra.mxu0 %v321
    %377 = vmatpush.bf16.msra.mxu0 %v320
    %378 = vmatpush.bf16.msra.mxu0 %v319
    %379 = vmatpush.bf16.msra.mxu0 %v318
    %380 = vmatpush.bf16.msra.mxu0 %v317
    %381 = vmatmul.bf16.gmra.mxu0 %v357
    %v382 = vpop.f32.mrf.mxu0
    %v383 = vadd.f32 0.0, %v382
    %v384 = vpop.f32.mrf.mxu0
    %v385 = vadd.f32 0.0, %v384
    %386 = vmatmul.bf16.gmra.mxu0 %v358
    %v387 = vpop.f32.mrf.mxu0
    %v388 = vadd.f32 0.0, %v387
    %v389 = vpop.f32.mrf.mxu0
    %v390 = vadd.f32 0.0, %v389
    %391 = vmatmul.bf16.gmra.mxu0 %v359
    %v392 = vpop.f32.mrf.mxu0
    %v393 = vadd.f32 0.0, %v392
    %v394 = vpop.f32.mrf.mxu0
    %v395 = vadd.f32 0.0, %v394
    %396 = vmatmul.bf16.gmra.mxu0 %v360
    %v397 = vpop.f32.mrf.mxu0
    %v398 = vadd.f32 0.0, %v397
    %v399 = vpop.f32.mrf.mxu0
    %v400 = vadd.f32 0.0, %v399
    %401 = vmatmul.bf16.gmra.mxu0 %v361
    %v402 = vpop.f32.mrf.mxu0
    %v403 = vadd.f32 0.0, %v402
    %v404 = vpop.f32.mrf.mxu0
    %v405 = vadd.f32 0.0, %v404
    %406 = vmatmul.bf16.gmra.mxu0 %v362
    %v407 = vpop.f32.mrf.mxu0
    %v408 = vadd.f32 0.0, %v407
    %v409 = vpop.f32.mrf.mxu0
    %v410 = vadd.f32 0.0, %v409
    %411 = vmatmul.bf16.gmra.mxu0 %v363
    %v412 = vpop.f32.mrf.mxu0
    %v413 = vadd.f32 0.0, %v412
    %v414 = vpop.f32.mrf.mxu0
    %v415 = vadd.f32 0.0, %v414
    %416 = vmatmul.bf16.gmra.mxu0 %v364
    %v417 = vpop.f32.mrf.mxu0
    %v418 = vadd.f32 0.0, %v417
    %v419 = vpop.f32.mrf.mxu0
    %v420 = vadd.f32 0.0, %v419
    %421 = vdwg.mxu0
    %v422 = vpack.c.bf16 %v385, %v383
    %v423 = vpack.c.bf16 %v390, %v388
    %v424 = vpack.c.bf16 %v395, %v393
    %v425 = vpack.c.bf16 %v400, %v398
    %v426 = vpack.c.bf16 %v405, %v403
    %v427 = vpack.c.bf16 %v410, %v408
    %v428 = vpack.c.bf16 %v415, %v413
    %v429 = vpack.c.bf16 %v420, %v418
    %v446 = vunpack.c.l.b16 %v120
    %v447 = vunpack.c.l.b16 %v121
    %v448 = vunpack.c.l.b16 %v122
    %v449 = vunpack.c.l.b16 %v123
    %v450 = vunpack.c.l.b16 %v124
    %v451 = vunpack.c.l.b16 %v125
    %v452 = vunpack.c.l.b16 %v126
    %v453 = vunpack.c.l.b16 %v127
    %v454 = vunpack.c.l.b16 %v128
    %v455 = vunpack.c.l.b16 %v129
    %v456 = vunpack.c.l.b16 %v130
    %v457 = vunpack.c.l.b16 %v131
    %v458 = vunpack.c.l.b16 %v132
    %v459 = vunpack.c.l.b16 %v133
    %v460 = vunpack.c.l.b16 %v134
    %v461 = vunpack.c.l.b16 %v135
    %v462 = vpack.c.b16 %v447, %v446
    %v463 = vpack.c.b16 %v449, %v448
    %v464 = vpack.c.b16 %v451, %v450
    %v465 = vpack.c.b16 %v453, %v452
    %v466 = vpack.c.b16 %v455, %v454
    %v467 = vpack.c.b16 %v457, %v456
    %v468 = vpack.c.b16 %v459, %v458
    %v469 = vpack.c.b16 %v461, %v460
    %478 = vmatpush.bf16.msra.mxu0 %v429
    %479 = vmatpush.bf16.msra.mxu0 %v428
    %480 = vmatpush.bf16.msra.mxu0 %v427
    %481 = vmatpush.bf16.msra.mxu0 %v426
    %482 = vmatpush.bf16.msra.mxu0 %v425
    %483 = vmatpush.bf16.msra.mxu0 %v424
    %484 = vmatpush.bf16.msra.mxu0 %v423
    %485 = vmatpush.bf16.msra.mxu0 %v422
    %486 = vmatmul.bf16.gmra.mxu0 %v462
    %v487 = vpop.f32.mrf.mxu0
    %v488 = vadd.f32 0.0, %v487
    %v489 = vpop.f32.mrf.mxu0
    %v490 = vadd.f32 0.0, %v489
    %491 = vmatmul.bf16.gmra.mxu0 %v463
    %v492 = vpop.f32.mrf.mxu0
    %v493 = vadd.f32 0.0, %v492
    %v494 = vpop.f32.mrf.mxu0
    %v495 = vadd.f32 0.0, %v494
    %496 = vmatmul.bf16.gmra.mxu0 %v464
    %v497 = vpop.f32.mrf.mxu0
    %v498 = vadd.f32 0.0, %v497
    %v499 = vpop.f32.mrf.mxu0
    %v500 = vadd.f32 0.0, %v499
    %501 = vmatmul.bf16.gmra.mxu0 %v465
    %v502 = vpop.f32.mrf.mxu0
    %v503 = vadd.f32 0.0, %v502
    %v504 = vpop.f32.mrf.mxu0
    %v505 = vadd.f32 0.0, %v504
    %506 = vmatmul.bf16.gmra.mxu0 %v466
    %v507 = vpop.f32.mrf.mxu0
    %v508 = vadd.f32 0.0, %v507
    %v509 = vpop.f32.mrf.mxu0
    %v510 = vadd.f32 0.0, %v509
    %511 = vmatmul.bf16.gmra.mxu0 %v467
    %v512 = vpop.f32.mrf.mxu0
    %v513 = vadd.f32 0.0, %v512
    %v514 = vpop.f32.mrf.mxu0
    %v515 = vadd.f32 0.0, %v514
    %516 = vmatmul.bf16.gmra.mxu0 %v468
    %v517 = vpop.f32.mrf.mxu0
    %v518 = vadd.f32 0.0, %v517
    %v519 = vpop.f32.mrf.mxu0
    %v520 = vadd.f32 0.0, %v519
    %521 = vmatmul.bf16.gmra.mxu0 %v469
    %v522 = vpop.f32.mrf.mxu0
    %v523 = vadd.f32 0.0, %v522
    %v524 = vpop.f32.mrf.mxu0
    %v525 = vadd.f32 0.0, %v524
    %526 = vdwg.mxu0
    %v527 = vmax.f32 %v488, 0.0
    %v528 = vmax.f32 %v490, 0.0
    %v529 = vmax.f32 %v493, 0.0
    %v530 = vmax.f32 %v495, 0.0
    %v531 = vmax.f32 %v498, 0.0
    %v532 = vmax.f32 %v500, 0.0
    %v533 = vmax.f32 %v503, 0.0
    %v534 = vmax.f32 %v505, 0.0
    %v535 = vmax.f32 %v508, 0.0
    %v536 = vmax.f32 %v510, 0.0
    %v537 = vmax.f32 %v513, 0.0
    %v538 = vmax.f32 %v515, 0.0
    %v539 = vmax.f32 %v518, 0.0
    %v540 = vmax.f32 %v520, 0.0
    %v541 = vmax.f32 %v523, 0.0
    %v542 = vmax.f32 %v525, 0.0
    %v543 = vpack.c.bf16 %v528, %v527
    %v544 = vpack.c.bf16 %v530, %v529
    %v545 = vpack.c.bf16 %v532, %v531
    %v546 = vpack.c.bf16 %v534, %v533
    %v547 = vpack.c.bf16 %v536, %v535
    %v548 = vpack.c.bf16 %v538, %v537
    %v549 = vpack.c.bf16 %v540, %v539
    %v550 = vpack.c.bf16 %v542, %v541
    %v551 = vld [vmem:[#allocation9] sm:$0xf]
    %v552 = vld [vmem:[#allocation9 + $0x4] sm:$0xf]
    %v553 = vld [vmem:[#allocation9 + $0x8] sm:$0xf]
    %v554 = vld [vmem:[#allocation9 + $0xc] sm:$0xf]
    %v555 = vld [vmem:[#allocation9 + $0x10] sm:$0xf]
    %v556 = vld [vmem:[#allocation9 + $0x14] sm:$0xf]
    %v557 = vld [vmem:[#allocation9 + $0x18] sm:$0xf]
    %v558 = vld [vmem:[#allocation9 + $0x1c] sm:$0xf]
    %v559 = vld [vmem:[#allocation9 + $0x20] sm:$0xf]
    %v560 = vld [vmem:[#allocation9 + $0x24] sm:$0xf]
    %v561 = vld [vmem:[#allocation9 + $0x28] sm:$0xf]
    %v562 = vld [vmem:[#allocation9 + $0x2c] sm:$0xf]
    %v563 = vld [vmem:[#allocation9 + $0x30] sm:$0xf]
    %v564 = vld [vmem:[#allocation9 + $0x34] sm:$0xf]
    %v565 = vld [vmem:[#allocation9 + $0x38] sm:$0xf]
    %v566 = vld [vmem:[#allocation9 + $0x3c] sm:$0xf]
    %v567 = vld [vmem:[%s6] sm:$0x1]
    %v569 = vperm.slane %v567, 0
    %v587 = vunpack.c.l.b16 %v551
    %v588 = vunpack.c.l.b16 %v552
    %v589 = vunpack.c.l.b16 %v553
    %v590 = vunpack.c.l.b16 %v554
    %v591 = vunpack.c.l.b16 %v555
    %v592 = vunpack.c.l.b16 %v556
    %v593 = vunpack.c.l.b16 %v557
    %v594 = vunpack.c.l.b16 %v558
    %v595 = vunpack.c.l.b16 %v559
    %v596 = vunpack.c.l.b16 %v560
    %v597 = vunpack.c.l.b16 %v561
    %v598 = vunpack.c.l.b16 %v562
    %v599 = vunpack.c.l.b16 %v563
    %v600 = vunpack.c.l.b16 %v564
    %v601 = vunpack.c.l.b16 %v565
    %v602 = vunpack.c.l.b16 %v566
    %v603 = vpack.c.b16 %v588, %v587
    %v604 = vpack.c.b16 %v590, %v589
    %v605 = vpack.c.b16 %v592, %v591
    %v606 = vpack.c.b16 %v594, %v593
    %v607 = vpack.c.b16 %v596, %v595
    %v608 = vpack.c.b16 %v598, %v597
    %v609 = vpack.c.b16 %v600, %v599
    %v610 = vpack.c.b16 %v602, %v601
    %619 = vmatpush.bf16.msra.mxu0 %v610
    %620 = vmatpush.bf16.msra.mxu0 %v609
    %621 = vmatpush.bf16.msra.mxu0 %v608
    %622 = vmatpush.bf16.msra.mxu0 %v607
    %623 = vmatpush.bf16.msra.mxu0 %v606
    %624 = vmatpush.bf16.msra.mxu0 %v605
    %625 = vmatpush.bf16.msra.mxu0 %v604
    %626 = vmatpush.bf16.msra.mxu0 %v603
    %627 = vmatmul.bf16.gmra.mxu0 %v543
    %v628 = vpop.f32.mrf.mxu0
    %v629 = vadd.f32 %v569, %v628
    %v630 = vpop.f32.mrf.mxu0
    %v631 = vadd.f32 %v569, %v630
    %632 = vmatmul.bf16.gmra.mxu0 %v544
    %v633 = vpop.f32.mrf.mxu0
    %v634 = vadd.f32 %v569, %v633
    %v635 = vpop.f32.mrf.mxu0
    %v636 = vadd.f32 %v569, %v635
    %637 = vmatmul.bf16.gmra.mxu0 %v545
    %v638 = vpop.f32.mrf.mxu0
    %v639 = vadd.f32 %v569, %v638
    %v640 = vpop.f32.mrf.mxu0
    %v641 = vadd.f32 %v569, %v640
    %642 = vmatmul.bf16.gmra.mxu0 %v546
    %v643 = vpop.f32.mrf.mxu0
    %v644 = vadd.f32 %v569, %v643
    %v645 = vpop.f32.mrf.mxu0
    %v646 = vadd.f32 %v569, %v645
    %647 = vmatmul.bf16.gmra.mxu0 %v547
    %v648 = vpop.f32.mrf.mxu0
    %v649 = vadd.f32 %v569, %v648
    %v650 = vpop.f32.mrf.mxu0
    %v651 = vadd.f32 %v569, %v650
    %652 = vmatmul.bf16.gmra.mxu0 %v548
    %v653 = vpop.f32.mrf.mxu0
    %v654 = vadd.f32 %v569, %v653
    %v655 = vpop.f32.mrf.mxu0
    %v656 = vadd.f32 %v569, %v655
    %657 = vmatmul.bf16.gmra.mxu0 %v549
    %v658 = vpop.f32.mrf.mxu0
    %v659 = vadd.f32 %v569, %v658
    %v660 = vpop.f32.mrf.mxu0
    %v661 = vadd.f32 %v569, %v660
    %662 = vmatmul.bf16.gmra.mxu0 %v550
    %v663 = vpop.f32.mrf.mxu0
    %v664 = vadd.f32 %v569, %v663
    %v665 = vpop.f32.mrf.mxu0
    %v666 = vadd.f32 %v569, %v665
    %667 = vdwg.mxu0
    %v668 = vpack.c.bf16 %v631, %v629
    %v669 = vpack.c.bf16 %v636, %v634
    %v670 = vpack.c.bf16 %v641, %v639
    %v671 = vpack.c.bf16 %v646, %v644
    %v672 = vpack.c.bf16 %v651, %v649
    %v673 = vpack.c.bf16 %v656, %v654
    %v674 = vpack.c.bf16 %v661, %v659
    %v675 = vpack.c.bf16 %v666, %v664
    %676 = vmatpush.bf16.msra.mxu0 %v675
    %677 = vmatpush.bf16.msra.mxu0 %v674
    %678 = vmatpush.bf16.msra.mxu0 %v673
    %679 = vmatpush.bf16.msra.mxu0 %v672
    %680 = vmatpush.bf16.msra.mxu0 %v671
    %681 = vmatpush.bf16.msra.mxu0 %v670
    %682 = vmatpush.bf16.msra.mxu0 %v669
    %683 = vmatpush.bf16.msra.mxu0 %v668
    %684 = vmatmul.bf16.gmra.mxu0 %v357
    %v685 = vpop.f32.mrf.mxu0
    %v686 = vadd.f32 0.0, %v685
    %v687 = vpop.f32.mrf.mxu0
    %v688 = vadd.f32 0.0, %v687
    %689 = vmatmul.bf16.gmra.mxu0 %v358
    %v690 = vpop.f32.mrf.mxu0
    %v691 = vadd.f32 0.0, %v690
    %v692 = vpop.f32.mrf.mxu0
    %v693 = vadd.f32 0.0, %v692
    %694 = vmatmul.bf16.gmra.mxu0 %v359
    %v695 = vpop.f32.mrf.mxu0
    %v696 = vadd.f32 0.0, %v695
    %v697 = vpop.f32.mrf.mxu0
    %v698 = vadd.f32 0.0, %v697
    %699 = vmatmul.bf16.gmra.mxu0 %v360
    %v700 = vpop.f32.mrf.mxu0
    %v701 = vadd.f32 0.0, %v700
    %v702 = vpop.f32.mrf.mxu0
    %v703 = vadd.f32 0.0, %v702
    %704 = vmatmul.bf16.gmra.mxu0 %v361
    %v705 = vpop.f32.mrf.mxu0
    %v706 = vadd.f32 0.0, %v705
    %v707 = vpop.f32.mrf.mxu0
    %v708 = vadd.f32 0.0, %v707
    %709 = vmatmul.bf16.gmra.mxu0 %v362
    %v710 = vpop.f32.mrf.mxu0
    %v711 = vadd.f32 0.0, %v710
    %v712 = vpop.f32.mrf.mxu0
    %v713 = vadd.f32 0.0, %v712
    %714 = vmatmul.bf16.gmra.mxu0 %v363
    %v715 = vpop.f32.mrf.mxu0
    %v716 = vadd.f32 0.0, %v715
    %v717 = vpop.f32.mrf.mxu0
    %v718 = vadd.f32 0.0, %v717
    %719 = vmatmul.bf16.gmra.mxu0 %v364
    %v720 = vpop.f32.mrf.mxu0
    %v721 = vadd.f32 0.0, %v720
    %v722 = vpop.f32.mrf.mxu0
    %v723 = vadd.f32 0.0, %v722
    %724 = vdwg.mxu0
    %v725 = vpack.c.bf16 %v688, %v686
    %v726 = vpack.c.bf16 %v693, %v691
    %v727 = vpack.c.bf16 %v698, %v696
    %v728 = vpack.c.bf16 %v703, %v701
    %v729 = vpack.c.bf16 %v708, %v706
    %v730 = vpack.c.bf16 %v713, %v711
    %v731 = vpack.c.bf16 %v718, %v716
    %v732 = vpack.c.bf16 %v723, %v721
    %733 = vmatpush.bf16.msra.mxu0 %v732
    %734 = vmatpush.bf16.msra.mxu0 %v731
    %735 = vmatpush.bf16.msra.mxu0 %v730
    %736 = vmatpush.bf16.msra.mxu0 %v729
    %737 = vmatpush.bf16.msra.mxu0 %v728
    %738 = vmatpush.bf16.msra.mxu0 %v727
    %739 = vmatpush.bf16.msra.mxu0 %v726
    %740 = vmatpush.bf16.msra.mxu0 %v725
    %741 = vmatmul.bf16.gmra.mxu0 %v462
    %v742 = vpop.f32.mrf.mxu0
    %v743 = vadd.f32 0.0, %v742
    %v744 = vpop.f32.mrf.mxu0
    %v745 = vadd.f32 0.0, %v744
    %746 = vmatmul.bf16.gmra.mxu0 %v463
    %v747 = vpop.f32.mrf.mxu0
    %v748 = vadd.f32 0.0, %v747
    %v749 = vpop.f32.mrf.mxu0
    %v750 = vadd.f32 0.0, %v749
    %751 = vmatmul.bf16.gmra.mxu0 %v464
    %v752 = vpop.f32.mrf.mxu0
    %v753 = vadd.f32 0.0, %v752
    %v754 = vpop.f32.mrf.mxu0
    %v755 = vadd.f32 0.0, %v754
    %756 = vmatmul.bf16.gmra.mxu0 %v465
    %v757 = vpop.f32.mrf.mxu0
    %v758 = vadd.f32 0.0, %v757
    %v759 = vpop.f32.mrf.mxu0
    %v760 = vadd.f32 0.0, %v759
    %761 = vmatmul.bf16.gmra.mxu0 %v466
    %v762 = vpop.f32.mrf.mxu0
    %v763 = vadd.f32 0.0, %v762
    %v764 = vpop.f32.mrf.mxu0
    %v765 = vadd.f32 0.0, %v764
    %766 = vmatmul.bf16.gmra.mxu0 %v467
    %v767 = vpop.f32.mrf.mxu0
    %v768 = vadd.f32 0.0, %v767
    %v769 = vpop.f32.mrf.mxu0
    %v770 = vadd.f32 0.0, %v769
    %771 = vmatmul.bf16.gmra.mxu0 %v468
    %v772 = vpop.f32.mrf.mxu0
    %v773 = vadd.f32 0.0, %v772
    %v774 = vpop.f32.mrf.mxu0
    %v775 = vadd.f32 0.0, %v774
    %776 = vmatmul.bf16.gmra.mxu0 %v469
    %v777 = vpop.f32.mrf.mxu0
    %v778 = vadd.f32 0.0, %v777
    %v779 = vpop.f32.mrf.mxu0
    %v780 = vadd.f32 0.0, %v779
    %781 = vdwg.mxu0
    %v782 = vxor.u32 %v743, 2147483648
    %v783 = vxor.u32 %v745, 2147483648
    %v784 = vxor.u32 %v748, 2147483648
    %v785 = vxor.u32 %v750, 2147483648
    %v786 = vxor.u32 %v753, 2147483648
    %v787 = vxor.u32 %v755, 2147483648
    %v788 = vxor.u32 %v758, 2147483648
    %v789 = vxor.u32 %v760, 2147483648
    %v790 = vxor.u32 %v763, 2147483648
    %v791 = vxor.u32 %v765, 2147483648
    %v792 = vxor.u32 %v768, 2147483648
    %v793 = vxor.u32 %v770, 2147483648
    %v794 = vxor.u32 %v773, 2147483648
    %v795 = vxor.u32 %v775, 2147483648
    %v796 = vxor.u32 %v778, 2147483648
    %v797 = vxor.u32 %v780, 2147483648
    %v798 = vmul.f32 %v782, 1.442695
    %v799 = vpow.pop %v798
    %v800 = vmul.f32 %v783, 1.442695
    %v801 = vpow.pop %v800
    %v802 = vmul.f32 %v784, 1.442695
    %v803 = vpow.pop %v802
    %v804 = vmul.f32 %v785, 1.442695
    %v805 = vpow.pop %v804
    %v806 = vmul.f32 %v786, 1.442695
    %v807 = vpow.pop %v806
    %v808 = vmul.f32 %v787, 1.442695
    %v809 = vpow.pop %v808
    %v810 = vmul.f32 %v788, 1.442695
    %v811 = vpow.pop %v810
    %v812 = vmul.f32 %v789, 1.442695
    %v813 = vpow.pop %v812
    %v814 = vmul.f32 %v790, 1.442695
    %v815 = vpow.pop %v814
    %v816 = vmul.f32 %v791, 1.442695
    %v817 = vpow.pop %v816
    %v818 = vmul.f32 %v792, 1.442695
    %v819 = vpow.pop %v818
    %v820 = vmul.f32 %v793, 1.442695
    %v821 = vpow.pop %v820
    %v822 = vmul.f32 %v794, 1.442695
    %v823 = vpow.pop %v822
    %v824 = vmul.f32 %v795, 1.442695
    %v825 = vpow.pop %v824
    %v826 = vmul.f32 %v796, 1.442695
    %v827 = vpow.pop %v826
    %v828 = vmul.f32 %v797, 1.442695
    %v829 = vpow.pop %v828
    %v830 = vadd.f32 %v799, 1.0
    %v831 = vadd.f32 %v801, 1.0
    %v832 = vadd.f32 %v803, 1.0
    %v833 = vadd.f32 %v805, 1.0
    %v834 = vadd.f32 %v807, 1.0
    %v835 = vadd.f32 %v809, 1.0
    %v836 = vadd.f32 %v811, 1.0
    %v837 = vadd.f32 %v813, 1.0
    %v838 = vadd.f32 %v815, 1.0
    %v839 = vadd.f32 %v817, 1.0
    %v840 = vadd.f32 %v819, 1.0
    %v841 = vadd.f32 %v821, 1.0
    %v842 = vadd.f32 %v823, 1.0
    %v843 = vadd.f32 %v825, 1.0
    %v844 = vadd.f32 %v827, 1.0
    %v845 = vadd.f32 %v829, 1.0
    %v846 = vrcp.pop %v830
    %v847 = vmul.f32 %v830, %v846
    %v848 = vsub.f32 1.0, %v847
    %v849 = vmul.f32 %v846, %v848
    %v850 = vadd.f32 %v846, %v849
    %vm851 = vweird.f32 %v830
    %vm852 = vweird.f32 %v846
    %vm853 = vmor %vm851, %vm852
    %v854 = vsel %vm853, %v846, %v850
    %v855 = vand.u32 2147483647, %v830
    %vm856 = vcmp.eq.f32.partialorder %v855, 8.507059e+37
    %v857 = vand.u32 %v830, 2147483648
    %v858 = vor.u32 1.1754944e-38, %v857
    %v859 = vsel %vm856, %v858, %v854
    %v860 = vmul.f32 1.0, %v859
    %v861 = vrcp.pop %v831
    %v862 = vmul.f32 %v831, %v861
    %v863 = vsub.f32 1.0, %v862
    %v864 = vmul.f32 %v861, %v863
    %v865 = vadd.f32 %v861, %v864
    %vm866 = vweird.f32 %v831
    %vm867 = vweird.f32 %v861
    %vm868 = vmor %vm866, %vm867
    %v869 = vsel %vm868, %v861, %v865
    %v870 = vand.u32 2147483647, %v831
    %vm871 = vcmp.eq.f32.partialorder %v870, 8.507059e+37
    %v872 = vand.u32 %v831, 2147483648
    %v873 = vor.u32 1.1754944e-38, %v872
    %v874 = vsel %vm871, %v873, %v869
    %v875 = vmul.f32 1.0, %v874
    %v876 = vrcp.pop %v832
    %v877 = vmul.f32 %v832, %v876
    %v878 = vsub.f32 1.0, %v877
    %v879 = vmul.f32 %v876, %v878
    %v880 = vadd.f32 %v876, %v879
    %vm881 = vweird.f32 %v832
    %vm882 = vweird.f32 %v876
    %vm883 = vmor %vm881, %vm882
    %v884 = vsel %vm883, %v876, %v880
    %v885 = vand.u32 2147483647, %v832
    %vm886 = vcmp.eq.f32.partialorder %v885, 8.507059e+37
    %v887 = vand.u32 %v832, 2147483648
    %v888 = vor.u32 1.1754944e-38, %v887
    %v889 = vsel %vm886, %v888, %v884
    %v890 = vmul.f32 1.0, %v889
    %v891 = vrcp.pop %v833
    %v892 = vmul.f32 %v833, %v891
    %v893 = vsub.f32 1.0, %v892
    %v894 = vmul.f32 %v891, %v893
    %v895 = vadd.f32 %v891, %v894
    %vm896 = vweird.f32 %v833
    %vm897 = vweird.f32 %v891
    %vm898 = vmor %vm896, %vm897
    %v899 = vsel %vm898, %v891, %v895
    %v900 = vand.u32 2147483647, %v833
    %vm901 = vcmp.eq.f32.partialorder %v900, 8.507059e+37
    %v902 = vand.u32 %v833, 2147483648
    %v903 = vor.u32 1.1754944e-38, %v902
    %v904 = vsel %vm901, %v903, %v899
    %v905 = vmul.f32 1.0, %v904
    %v906 = vrcp.pop %v834
    %v907 = vmul.f32 %v834, %v906
    %v908 = vsub.f32 1.0, %v907
    %v909 = vmul.f32 %v906, %v908
    %v910 = vadd.f32 %v906, %v909
    %vm911 = vweird.f32 %v834
    %vm912 = vweird.f32 %v906
    %vm913 = vmor %vm911, %vm912
    %v914 = vsel %vm913, %v906, %v910
    %v915 = vand.u32 2147483647, %v834
    %vm916 = vcmp.eq.f32.partialorder %v915, 8.507059e+37
    %v917 = vand.u32 %v834, 2147483648
    %v918 = vor.u32 1.1754944e-38, %v917
    %v919 = vsel %vm916, %v918, %v914
    %v920 = vmul.f32 1.0, %v919
    %v921 = vrcp.pop %v835
    %v922 = vmul.f32 %v835, %v921
    %v923 = vsub.f32 1.0, %v922
    %v924 = vmul.f32 %v921, %v923
    %v925 = vadd.f32 %v921, %v924
    %vm926 = vweird.f32 %v835
    %vm927 = vweird.f32 %v921
    %vm928 = vmor %vm926, %vm927
    %v929 = vsel %vm928, %v921, %v925
    %v930 = vand.u32 2147483647, %v835
    %vm931 = vcmp.eq.f32.partialorder %v930, 8.507059e+37
    %v932 = vand.u32 %v835, 2147483648
    %v933 = vor.u32 1.1754944e-38, %v932
    %v934 = vsel %vm931, %v933, %v929
    %v935 = vmul.f32 1.0, %v934
    %v936 = vrcp.pop %v836
    %v937 = vmul.f32 %v836, %v936
    %v938 = vsub.f32 1.0, %v937
    %v939 = vmul.f32 %v936, %v938
    %v940 = vadd.f32 %v936, %v939
    %vm941 = vweird.f32 %v836
    %vm942 = vweird.f32 %v936
    %vm943 = vmor %vm941, %vm942
    %v944 = vsel %vm943, %v936, %v940
    %v945 = vand.u32 2147483647, %v836
    %vm946 = vcmp.eq.f32.partialorder %v945, 8.507059e+37
    %v947 = vand.u32 %v836, 2147483648
    %v948 = vor.u32 1.1754944e-38, %v947
    %v949 = vsel %vm946, %v948, %v944
    %v950 = vmul.f32 1.0, %v949
    %v951 = vrcp.pop %v837
    %v952 = vmul.f32 %v837, %v951
    %v953 = vsub.f32 1.0, %v952
    %v954 = vmul.f32 %v951, %v953
    %v955 = vadd.f32 %v951, %v954
    %vm956 = vweird.f32 %v837
    %vm957 = vweird.f32 %v951
    %vm958 = vmor %vm956, %vm957
    %v959 = vsel %vm958, %v951, %v955
    %v960 = vand.u32 2147483647, %v837
    %vm961 = vcmp.eq.f32.partialorder %v960, 8.507059e+37
    %v962 = vand.u32 %v837, 2147483648
    %v963 = vor.u32 1.1754944e-38, %v962
    %v964 = vsel %vm961, %v963, %v959
    %v965 = vmul.f32 1.0, %v964
    %v966 = vrcp.pop %v838
    %v967 = vmul.f32 %v838, %v966
    %v968 = vsub.f32 1.0, %v967
    %v969 = vmul.f32 %v966, %v968
    %v970 = vadd.f32 %v966, %v969
    %vm971 = vweird.f32 %v838
    %vm972 = vweird.f32 %v966
    %vm973 = vmor %vm971, %vm972
    %v974 = vsel %vm973, %v966, %v970
    %v975 = vand.u32 2147483647, %v838
    %vm976 = vcmp.eq.f32.partialorder %v975, 8.507059e+37
    %v977 = vand.u32 %v838, 2147483648
    %v978 = vor.u32 1.1754944e-38, %v977
    %v979 = vsel %vm976, %v978, %v974
    %v980 = vmul.f32 1.0, %v979
    %v981 = vrcp.pop %v839
    %v982 = vmul.f32 %v839, %v981
    %v983 = vsub.f32 1.0, %v982
    %v984 = vmul.f32 %v981, %v983
    %v985 = vadd.f32 %v981, %v984
    %vm986 = vweird.f32 %v839
    %vm987 = vweird.f32 %v981
    %vm988 = vmor %vm986, %vm987
    %v989 = vsel %vm988, %v981, %v985
    %v990 = vand.u32 2147483647, %v839
    %vm991 = vcmp.eq.f32.partialorder %v990, 8.507059e+37
    %v992 = vand.u32 %v839, 2147483648
    %v993 = vor.u32 1.1754944e-38, %v992
    %v994 = vsel %vm991, %v993, %v989
    %v995 = vmul.f32 1.0, %v994
    %v996 = vrcp.pop %v840
    %v997 = vmul.f32 %v840, %v996
    %v998 = vsub.f32 1.0, %v997
    %v999 = vmul.f32 %v996, %v998
    %v1000 = vadd.f32 %v996, %v999
    %vm1001 = vweird.f32 %v840
    %vm1002 = vweird.f32 %v996
    %vm1003 = vmor %vm1001, %vm1002
    %v1004 = vsel %vm1003, %v996, %v1000
    %v1005 = vand.u32 2147483647, %v840
    %vm1006 = vcmp.eq.f32.partialorder %v1005, 8.507059e+37
    %v1007 = vand.u32 %v840, 2147483648
    %v1008 = vor.u32 1.1754944e-38, %v1007
    %v1009 = vsel %vm1006, %v1008, %v1004
    %v1010 = vmul.f32 1.0, %v1009
    %v1011 = vrcp.pop %v841
    %v1012 = vmul.f32 %v841, %v1011
    %v1013 = vsub.f32 1.0, %v1012
    %v1014 = vmul.f32 %v1011, %v1013
    %v1015 = vadd.f32 %v1011, %v1014
    %vm1016 = vweird.f32 %v841
    %vm1017 = vweird.f32 %v1011
    %vm1018 = vmor %vm1016, %vm1017
    %v1019 = vsel %vm1018, %v1011, %v1015
    %v1020 = vand.u32 2147483647, %v841
    %vm1021 = vcmp.eq.f32.partialorder %v1020, 8.507059e+37
    %v1022 = vand.u32 %v841, 2147483648
    %v1023 = vor.u32 1.1754944e-38, %v1022
    %v1024 = vsel %vm1021, %v1023, %v1019
    %v1025 = vmul.f32 1.0, %v1024
    %v1026 = vrcp.pop %v842
    %v1027 = vmul.f32 %v842, %v1026
    %v1028 = vsub.f32 1.0, %v1027
    %v1029 = vmul.f32 %v1026, %v1028
    %v1030 = vadd.f32 %v1026, %v1029
    %vm1031 = vweird.f32 %v842
    %vm1032 = vweird.f32 %v1026
    %vm1033 = vmor %vm1031, %vm1032
    %v1034 = vsel %vm1033, %v1026, %v1030
    %v1035 = vand.u32 2147483647, %v842
    %vm1036 = vcmp.eq.f32.partialorder %v1035, 8.507059e+37
    %v1037 = vand.u32 %v842, 2147483648
    %v1038 = vor.u32 1.1754944e-38, %v1037
    %v1039 = vsel %vm1036, %v1038, %v1034
    %v1040 = vmul.f32 1.0, %v1039
    %v1041 = vrcp.pop %v843
    %v1042 = vmul.f32 %v843, %v1041
    %v1043 = vsub.f32 1.0, %v1042
    %v1044 = vmul.f32 %v1041, %v1043
    %v1045 = vadd.f32 %v1041, %v1044
    %vm1046 = vweird.f32 %v843
    %vm1047 = vweird.f32 %v1041
    %vm1048 = vmor %vm1046, %vm1047
    %v1049 = vsel %vm1048, %v1041, %v1045
    %v1050 = vand.u32 2147483647, %v843
    %vm1051 = vcmp.eq.f32.partialorder %v1050, 8.507059e+37
    %v1052 = vand.u32 %v843, 2147483648
    %v1053 = vor.u32 1.1754944e-38, %v1052
    %v1054 = vsel %vm1051, %v1053, %v1049
    %v1055 = vmul.f32 1.0, %v1054
    %v1056 = vrcp.pop %v844
    %v1057 = vmul.f32 %v844, %v1056
    %v1058 = vsub.f32 1.0, %v1057
    %v1059 = vmul.f32 %v1056, %v1058
    %v1060 = vadd.f32 %v1056, %v1059
    %vm1061 = vweird.f32 %v844
    %vm1062 = vweird.f32 %v1056
    %vm1063 = vmor %vm1061, %vm1062
    %v1064 = vsel %vm1063, %v1056, %v1060
    %v1065 = vand.u32 2147483647, %v844
    %vm1066 = vcmp.eq.f32.partialorder %v1065, 8.507059e+37
    %v1067 = vand.u32 %v844, 2147483648
    %v1068 = vor.u32 1.1754944e-38, %v1067
    %v1069 = vsel %vm1066, %v1068, %v1064
    %v1070 = vmul.f32 1.0, %v1069
    %v1071 = vrcp.pop %v845
    %v1072 = vmul.f32 %v845, %v1071
    %v1073 = vsub.f32 1.0, %v1072
    %v1074 = vmul.f32 %v1071, %v1073
    %v1075 = vadd.f32 %v1071, %v1074
    %vm1076 = vweird.f32 %v845
    %vm1077 = vweird.f32 %v1071
    %vm1078 = vmor %vm1076, %vm1077
    %v1079 = vsel %vm1078, %v1071, %v1075
    %v1080 = vand.u32 2147483647, %v845
    %vm1081 = vcmp.eq.f32.partialorder %v1080, 8.507059e+37
    %v1082 = vand.u32 %v845, 2147483648
    %v1083 = vor.u32 1.1754944e-38, %v1082
    %v1084 = vsel %vm1081, %v1083, %v1079
    %v1085 = vmul.f32 1.0, %v1084
    %v1086 = vpack.c.bf16 %v860, %v860
    %v1087 = vpack.c.bf16 %v875, %v875
    %v1088 = vpack.c.bf16 %v890, %v890
    %v1089 = vpack.c.bf16 %v905, %v905
    %v1090 = vpack.c.bf16 %v920, %v920
    %v1091 = vpack.c.bf16 %v935, %v935
    %v1092 = vpack.c.bf16 %v950, %v950
    %v1093 = vpack.c.bf16 %v965, %v965
    %v1094 = vpack.c.bf16 %v980, %v980
    %v1095 = vpack.c.bf16 %v995, %v995
    %v1096 = vpack.c.bf16 %v1010, %v1010
    %v1097 = vpack.c.bf16 %v1025, %v1025
    %v1098 = vpack.c.bf16 %v1040, %v1040
    %v1099 = vpack.c.bf16 %v1055, %v1055
    %v1100 = vpack.c.bf16 %v1070, %v1070
    %v1101 = vpack.c.bf16 %v1085, %v1085
    %1102 = vst [vmem:[#allocation10] sm:$0xf] %v1086
    %1103 = vst [vmem:[#allocation10 + $0x4] sm:$0xf] %v1087
    %1104 = vst [vmem:[#allocation10 + $0x8] sm:$0xf] %v1088
    %1105 = vst [vmem:[#allocation10 + $0xc] sm:$0xf] %v1089
    %1106 = vst [vmem:[#allocation10 + $0x10] sm:$0xf] %v1090
    %1107 = vst [vmem:[#allocation10 + $0x14] sm:$0xf] %v1091
    %1108 = vst [vmem:[#allocation10 + $0x18] sm:$0xf] %v1092
    %1109 = vst [vmem:[#allocation10 + $0x1c] sm:$0xf] %v1093
    %1110 = vst [vmem:[#allocation10 + $0x20] sm:$0xf] %v1094
    %1111 = vst [vmem:[#allocation10 + $0x24] sm:$0xf] %v1095
    %1112 = vst [vmem:[#allocation10 + $0x28] sm:$0xf] %v1096
    %1113 = vst [vmem:[#allocation10 + $0x2c] sm:$0xf] %v1097
    %1114 = vst [vmem:[#allocation10 + $0x30] sm:$0xf] %v1098
    %1115 = vst [vmem:[#allocation10 + $0x34] sm:$0xf] %v1099
    %1116 = vst [vmem:[#allocation10 + $0x38] sm:$0xf] %v1100
    %1117 = vst [vmem:[#allocation10 + $0x3c] sm:$0xf] %v1101
    // Predicated region
    $region44: #{tpu_custom_call.1} parent=1 // pred_check
      _
    $region45: #{tpu_custom_call.1} parent=1 // pred_check_branch
      %1119 = sbr.rel (0) target = $region47
    $region46: #{tpu_custom_call.1} parent=1 // pred_region
      %1121 = vsyncadd [#allocation6], 0
      %s1122 = sshll.u32 [#allocation10], 4
      %s1123 = int_to_ptr.vmem [resolvable:$true] %s1122
      %s1124 = sshll.u32 %s7, 4
      %s1125 = int_to_ptr.hbm [resolvable:$true] %s1124
      %1130 = dma.vmem_to_hbm [thread:$0]  %s1123, 1024, %s1125, [#allocation6], 64, 64, 4
    $region47: #{tpu_custom_call.1} parent=1 // pred_fallthru
      _
    // Predicated region
    $region48: #{tpu_custom_call.1} parent=1 // pred_check
      _
    $region49: #{tpu_custom_call.1} parent=1 // pred_check_branch
      %1132 = sbr.rel (0) target = $region51
    $region50: #{tpu_custom_call.1} parent=1 // pred_region
      %1134 = dma.done [#allocation6], 1024
    $region51: #{tpu_custom_call.1} parent=1 // pred_fallthru
      _
    %1135 = vsyncpa [#allocation5], 1
    %1136 = vsyncpa [#allocation8], 1
    %1137 = vsyncpa [#allocation6], 1

</llo_original>
